<compile_context>
chip_gen: v5e
topology: v5e:2x2
jax: 0.10.0
libtpu: 0.0.40
codegen_flags: <defaults>
</compile_context>

<pallas_src>
import functools

import jax
import jax.numpy as jnp
from jax.experimental import pallas as pl
from jax.experimental.pallas import tpu as pltpu

LANES = 128
SUBLANES = 8
MAX_ROW_TILE = 4096        # 4096 x 128 x 4 B = 2 MiB per f32 input tile
MIN_ROW_TILE = 512         # don't shrink tiles below this when splitting for megacore
CHUNK_ROWS = 256           # inner-loop sub-chunk: 256 x 128 x 4 B = 128 KiB temporaries
TARGET_TILES = 4           # aim for >= 2 grid steps per TensorCore (v7x has 2 TCs)
VMEM_LIMIT_BYTES = 32 * 1024 * 1024


def _bce_partial_kernel(x_ref, t_ref, out_ref, *, n_valid, row_tile, chunk, has_pad):
    """Emits one (8, 128) partial sum of the element-wise BCE loss per grid step."""
    n_chunks = row_tile // chunk
    tile = pl.program_id(0)

    def chunk_partial(c, masked):
        # Load one sub-chunk of rows (bounded live range: ~CHUNK_ROWS x 128 temps).
        if n_chunks == 1:
            x = x_ref[...].astype(jnp.float32)
            t = t_ref[...].astype(jnp.float32)
            row0 = tile * row_tile
        else:
            r0 = pl.multiple_of(c * chunk, chunk)
            x = x_ref[pl.ds(r0, chunk), :].astype(jnp.float32)
            t = t_ref[pl.ds(r0, chunk), :].astype(jnp.float32)
            row0 = tile * row_tile + c * chunk

        # z = x if target == 1 else -x ;  -log(sigmoid(z)) == softplus(-z)  (stable).
        z = jnp.where(t == 1.0, x, -x)
        loss = jnp.maximum(-z, 0.0) + jnp.log1p(jnp.exp(-jnp.abs(z)))

        if masked:
            # Only the final grid step can contain invalid (pad / ragged-block) elements.
            r = jax.lax.broadcasted_iota(jnp.int32, (chunk, LANES), 0)
            l = jax.lax.broadcasted_iota(jnp.int32, (chunk, LANES), 1)
            flat = (row0 + r) * LANES + l
            loss = jnp.where(flat < n_valid, loss, 0.0)

        # Fold groups of 8 rows into an (8, 128) block: pure vreg-aligned VALU adds.
        return loss.reshape(chunk // SUBLANES, SUBLANES, LANES).sum(axis=0)

    def accumulate(masked):
        if n_chunks == 1:
            return chunk_partial(0, masked)
        init = jnp.zeros((SUBLANES, LANES), jnp.float32)
        return jax.lax.fori_loop(
            0, n_chunks, lambda c, acc: acc + chunk_partial(c, masked), init,
            unroll=True)

    if has_pad:
        last = pl.num_programs(0) - 1

        @pl.when(tile != last)
        def _():
            out_ref[...] = accumulate(False)

        @pl.when(tile == last)
        def _():
            out_ref[...] = accumulate(True)
    else:
        out_ref[...] = accumulate(False)


def _pick_tiling(rows):
    """Pick (row_tile, chunk): chunk divides row_tile, both multiples of 8."""
    row_cap = (rows // SUBLANES) * SUBLANES            # rows >= 8 guaranteed by caller
    want = max(MIN_ROW_TILE, pl.cdiv(rows, TARGET_TILES))
    row_tile = min(MAX_ROW_TILE, want, row_cap)
    if row_tile >= CHUNK_ROWS:
        row_tile = (row_tile // CHUNK_ROWS) * CHUNK_ROWS
    else:
        row_tile = (row_tile // SUBLANES) * SUBLANES
    chunk = min(CHUNK_ROWS, row_tile)
    return row_tile, chunk


def custom_bce_loss(x, target):
    """Mean BCE-with-logits loss of x vs. target (same arbitrary shape), float32."""
    assert x.shape == target.shape
    n_valid = x.size

    flat_x = jnp.ravel(x)
    flat_t = jnp.ravel(target)

    # Lane-dense layout: rows of 128 lanes; at least 8 rows so the (8,128) fold works.
    rows = max(pl.cdiv(n_valid, LANES), SUBLANES)
    lane_pad = rows * LANES - n_valid
    if lane_pad:
        # Only hit when numel isn't a multiple of 128 (or numel < 1024).  Ragged last
        # grid block + in-kernel masking handles all other misalignment without copies.
        flat_x = jnp.pad(flat_x, (0, lane_pad))
        flat_t = jnp.pad(flat_t, (0, lane_pad))
    x2 = flat_x.reshape(rows, LANES)
    t2 = flat_t.reshape(rows, LANES)

    row_tile, chunk = _pick_tiling(rows)
    num_tiles = pl.cdiv(rows, row_tile)
    has_pad = num_tiles * row_tile * LANES != n_valid
    # Invariants the kernel relies on: all invalid elements live in the last tile,
    # and the sub-chunk evenly divides the tile.
    assert num_tiles * row_tile * LANES - n_valid < row_tile * LANES
    assert row_tile % chunk == 0 and chunk % SUBLANES == 0

    in_spec = pl.BlockSpec((row_tile, LANES), lambda i: (i, 0))

    partials = pl.pallas_call(
        functools.partial(
            _bce_partial_kernel,
            n_valid=n_valid, row_tile=row_tile, chunk=chunk, has_pad=has_pad),
        out_shape=jax.ShapeDtypeStruct((num_tiles * SUBLANES, LANES), jnp.float32),
        grid_spec=pltpu.PrefetchScalarGridSpec(
            num_scalar_prefetch=0,
            grid=(num_tiles,),
            in_specs=[in_spec, in_spec],
            out_specs=pl.BlockSpec((SUBLANES, LANES), lambda i: (i, 0)),
        ),
        compiler_params=pltpu.CompilerParams(
            dimension_semantics=("parallel",),   # independent partials -> megacore split
            vmem_limit_bytes=VMEM_LIMIT_BYTES,
        ),
    )(x2, t2)

    # Tiny final combine (num_tiles * 8 * 128 f32 values) in plain JAX.
    return jnp.sum(partials) / jnp.float32(n_valid)


if __name__ == "__main__":
    key = jax.random.PRNGKey(0)
    kx, kt = jax.random.split(key)
    # Small NCHW-shaped logits and binary targets of the same shape.
    x = jax.random.normal(kx, (2, 4, 16, 16), dtype=jnp.float32)
    target = jax.random.bernoulli(kt, 0.5, (2, 4, 16, 16)).astype(jnp.float32)

    loss = custom_bce_loss(x, target)
    jax.block_until_ready(loss)

    ref = jnp.mean(-jnp.log(jnp.where(target == 1.0,
                                      jax.nn.sigmoid(x),
                                      jax.nn.sigmoid(-x))))
    assert jnp.allclose(loss, ref, rtol=1e-5, atol=1e-6), (loss, ref)
    print("KERNEL_OK")
</pallas_src>

<mosaic_0001>
module attributes {stable_mosaic.version = 11 : i64} {
  func.func @_bce_partial_kernel(%arg0: i32, %arg1: memref<16x128xf32, #tpu.memory_space<vmem>>, %arg2: memref<16x128xf32, #tpu.memory_space<vmem>>, %arg3: memref<8x128xf32, #tpu.memory_space<vmem>>) attributes {dimension_semantics = [#tpu.dimension_semantics<parallel>], iteration_bounds = array<i64: 1>, scalar_prefetch = 0 : i64, scratch_operands = 0 : i64, tpu.core_type = #tpu.core_type<tc>, window_params = [{transform_indices = @transform_0, window_bounds = array<i64: 16, 128>}, {transform_indices = @transform_1, window_bounds = array<i64: 16, 128>}, {transform_indices = @transform_2, window_bounds = array<i64: 8, 128>}]} {
    %c0 = arith.constant 0 : index
    %c0_0 = arith.constant 0 : index
    %0 = vector.load %arg1[%c0, %c0_0] : memref<16x128xf32, #tpu.memory_space<vmem>>, vector<16x128xf32>
    %c0_1 = arith.constant 0 : index
    %c0_2 = arith.constant 0 : index
    %1 = vector.load %arg2[%c0_1, %c0_2] : memref<16x128xf32, #tpu.memory_space<vmem>>, vector<16x128xf32>
    %cst = arith.constant 1.000000e+00 : f32
    %2 = vector.broadcast %cst : f32 to vector<16x128xf32>
    %3 = arith.cmpf oeq, %1, %2 : vector<16x128xf32>
    %cst_3 = arith.constant 0.000000e+00 : f32
    %4 = vector.broadcast %cst_3 : f32 to vector<16x128xf32>
    %5 = arith.subf %4, %0 : vector<16x128xf32>
    %6 = arith.select %3, %0, %5 : vector<16x128xi1>, vector<16x128xf32>
    %cst_4 = arith.constant 0.000000e+00 : f32
    %7 = vector.broadcast %cst_4 : f32 to vector<16x128xf32>
    %8 = arith.subf %7, %6 : vector<16x128xf32>
    %cst_5 = arith.constant 0.000000e+00 : f32
    %9 = vector.broadcast %cst_5 : f32 to vector<16x128xf32>
    %10 = arith.maximumf %8, %9 : vector<16x128xf32>
    %11 = math.absf %6 : vector<16x128xf32>
    %cst_6 = arith.constant 0.000000e+00 : f32
    %12 = vector.broadcast %cst_6 : f32 to vector<16x128xf32>
    %13 = arith.subf %12, %11 : vector<16x128xf32>
    %14 = math.exp %13 : vector<16x128xf32>
    %15 = math.log1p %14 : vector<16x128xf32>
    %16 = arith.addf %10, %15 : vector<16x128xf32>
    %17 = vector.shape_cast %16 : vector<16x128xf32> to vector<2x8x128xf32>
    %cst_7 = arith.constant dense<0.000000e+00> : vector<8x128xf32>
    %18 = vector.multi_reduction <add>, %17, %cst_7 [0] : vector<2x8x128xf32> to vector<8x128xf32>
    %c0_8 = arith.constant 0 : index
    %c0_9 = arith.constant 0 : index
    %19 = vector.load %arg3[%c0_8, %c0_9] : memref<8x128xf32, #tpu.memory_space<vmem>>, vector<8x128xf32>
    tpu.vector_store %arg3[%c0_8, %c0_9], %18 {strides = array<i32>} : memref<8x128xf32, #tpu.memory_space<vmem>>, vector<8x128xf32>,
    return
  }
  func.func @transform_0(%arg0: i32) -> (i32, i32) {
    %c0_i32 = arith.constant 0 : i32
    %c0_i32_0 = arith.constant 0 : i32
    return %arg0, %c0_i32 : i32, i32
  }
  func.func @transform_1(%arg0: i32) -> (i32, i32) {
    %c0_i32 = arith.constant 0 : i32
    %c0_i32_0 = arith.constant 0 : i32
    return %arg0, %c0_i32 : i32, i32
  }
  func.func @transform_2(%arg0: i32) -> (i32, i32) {
    %c0_i32 = arith.constant 0 : i32
    %c0_i32_0 = arith.constant 0 : i32
    return %arg0, %c0_i32 : i32, i32
  }
}

</mosaic_0001>

<llo_original>
// kernel: tpu_custom_call.1
$region0: #{tpu_custom_call.1}
  #allocation0 [shape = 'u32[]', space=smem, size = 0x4, offset = 0x4, fixed_abs, tag = 'smem constant byte address 0x4 - core index']
  #allocation1 [shape = 'u32[72,128]{1,0:T(1,128)}', space=vmem, size = 0x9000, scoped, tag = 'internal scratch']
  %s0 = inlined_call_operand.hbm [shape: f32[16,128], index: 0, kind: input, shape index: {}]
  %s1 = inlined_call_operand.hbm [shape: f32[16,128], index: 1, kind: input, shape index: {}]
  %s2 = inlined_call_operand.hbm [shape: f32[8,128], index: 2, kind: output, shape index: {}]
  %s3 = sld [smem:[#allocation0]]
  $region26: #{tpu_custom_call.1} parent=0
    _
  %s5 = ssub.s32 1, %s3
  %s6 = scalar_select 0, %s5, %s3
  $region1: #{tpu_custom_call.1} parent=0
    #allocation2 [shape = 'u8[8192]{0}', space=vmem, size = 0x2000, scoped, tag = 'input window, operand 0, single buffered']
    #allocation3 [shape = 's32[1]{0}', space=sflag, size = 0x4, scoped, tag = 'scoped memory for tpu_custom_call.1']
    #allocation4 [shape = 's32[1]{0}', space=sflag, size = 0x4, scoped, tag = 'scoped memory for tpu_custom_call.1']
    #allocation5 [shape = 'u8[8192]{0}', space=vmem, size = 0x2000, scoped, tag = 'input window, operand 1, single buffered']
    #allocation6 [shape = 's32[1]{0}', space=sflag, size = 0x4, scoped, tag = 'scoped memory for tpu_custom_call.1']
    #allocation7 [shape = 'u8[4096]{0}', space=vmem, size = 0x1000, scoped, tag = 'output window, operand 0, single buffered']
    %7 = vsyncpa [#allocation3], 0
    %8 = vsyncpa [#allocation6], 0
    %9 = vsyncpa [#allocation4], 0
    // Predicated region
    $region2: #{tpu_custom_call.1} parent=1 // pred_check
      _
    $region3: #{tpu_custom_call.1} parent=1 // pred_check_branch
      %11 = sbr.rel (0) target = $region5
    $region4: #{tpu_custom_call.1} parent=1 // pred_region
      %13 = vsyncadd [#allocation3], 0
      %s14 = sshll.u32 %s0, 4
      %s15 = int_to_ptr.hbm [resolvable:$true] %s14
      %s16 = sshll.u32 [#allocation2], 4
      %s17 = int_to_ptr.vmem [resolvable:$true] %s16
      %22 = dma.hbm_to_vmem [thread:$0]  %s15, 256, %s17, [#allocation3], 128, 128, 8
    $region5: #{tpu_custom_call.1} parent=1 // pred_fallthru
      _
    // Predicated region
    $region6: #{tpu_custom_call.1} parent=1 // pred_check
      _
    $region7: #{tpu_custom_call.1} parent=1 // pred_check_branch
      %24 = sbr.rel (0) target = $region9
    $region8: #{tpu_custom_call.1} parent=1 // pred_region
      %26 = vsyncadd [#allocation6], 0
      %s27 = sshll.u32 %s1, 4
      %s28 = int_to_ptr.hbm [resolvable:$true] %s27
      %s29 = sshll.u32 [#allocation5], 4
      %s30 = int_to_ptr.vmem [resolvable:$true] %s29
      %35 = dma.hbm_to_vmem [thread:$0]  %s28, 256, %s30, [#allocation6], 128, 128, 8
    $region9: #{tpu_custom_call.1} parent=1 // pred_fallthru
      _
    // Predicated region
    $region10: #{tpu_custom_call.1} parent=1 // pred_check
      _
    $region11: #{tpu_custom_call.1} parent=1 // pred_check_branch
      %37 = sbr.rel (0) target = $region13
    $region12: #{tpu_custom_call.1} parent=1 // pred_region
      %39 = dma.done [#allocation3], 256
    $region13: #{tpu_custom_call.1} parent=1 // pred_fallthru
      _
    // Predicated region
    $region14: #{tpu_custom_call.1} parent=1 // pred_check
      _
    $region15: #{tpu_custom_call.1} parent=1 // pred_check_branch
      %41 = sbr.rel (0) target = $region17
    $region16: #{tpu_custom_call.1} parent=1 // pred_region
      %43 = dma.done [#allocation6], 256
    $region17: #{tpu_custom_call.1} parent=1 // pred_fallthru
      _
    %v44 = vld [vmem:[#allocation2] sm:$0xff]
    %v45 = vld [vmem:[#allocation2 + $0x8] sm:$0xff]
    %v46 = vld [vmem:[#allocation5] sm:$0xff]
    %v47 = vld [vmem:[#allocation5 + $0x8] sm:$0xff]
    %vm48 = vcmp.eq.f32.partialorder %v46, 1.0
    %vm49 = vcmp.eq.f32.partialorder %v47, 1.0
    %v50 = vsub.f32 0.0, %v44
    %v51 = vsub.f32 0.0, %v45
    %v52 = vsel %vm48, %v44, %v50
    %v53 = vsel %vm49, %v45, %v51
    %v54 = vsub.f32 0.0, %v52
    %v55 = vsub.f32 0.0, %v53
    %v56 = vmax.f32 %v54, 0.0
    %v57 = vmax.f32 %v55, 0.0
    %v58 = vand.u32 2147483647, %v52
    %v59 = vand.u32 2147483647, %v53
    %v60 = vsub.f32 0.0, %v58
    %v61 = vsub.f32 0.0, %v59
    %v62 = vmul.f32 %v60, 1.442695
    %v63 = vpow.pop %v62
    %v64 = vmul.f32 %v61, 1.442695
    %v65 = vpow.pop %v64
    %v66 = vadd.f32 %v63, 1.0
    %v67 = vlog2.pop %v66
    %v68 = vmul.f32 %v67, 0.6931472
    %v69 = vmul.f32 -0.5, %v63
    %v70 = vadd.f32 %v69, 1.0
    %v71 = vmul.f32 %v70, %v63
    %v72 = vand.u32 2147483647, %v63
    %vm73 = vcmp.lt.f32.partialorder %v72, 0.0004427343
    %v74 = vsel %vm73, %v71, %v68
    %v75 = vadd.f32 %v65, 1.0
    %v76 = vlog2.pop %v75
    %v77 = vmul.f32 %v76, 0.6931472
    %v78 = vmul.f32 -0.5, %v65
    %v79 = vadd.f32 %v78, 1.0
    %v80 = vmul.f32 %v79, %v65
    %v81 = vand.u32 2147483647, %v65
    %vm82 = vcmp.lt.f32.partialorder %v81, 0.0004427343
    %v83 = vsel %vm82, %v80, %v77
    %v84 = vadd.f32 %v56, %v74
    %v85 = vadd.f32 %v57, %v83
    %v86 = vadd.f32 %v84, %v85
    %87 = vst [vmem:[#allocation7] sm:$0xff] %v86
    // Predicated region
    $region18: #{tpu_custom_call.1} parent=1 // pred_check
      _
    $region19: #{tpu_custom_call.1} parent=1 // pred_check_branch
      %89 = sbr.rel (0) target = $region21
    $region20: #{tpu_custom_call.1} parent=1 // pred_region
      %91 = vsyncadd [#allocation4], 0
      %s93 = sshll.u32 [#allocation7], 4
      %s94 = int_to_ptr.vmem [resolvable:$true] %s93
      %s95 = sshll.u32 %s2, 4
      %s96 = int_to_ptr.hbm [resolvable:$true] %s95
      %98 = dma.vmem_to_hbm [thread:$0]  %s94, 128, %s96, [#allocation4]
    $region21: #{tpu_custom_call.1} parent=1 // pred_fallthru
      _
    // Predicated region
    $region22: #{tpu_custom_call.1} parent=1 // pred_check
      _
    $region23: #{tpu_custom_call.1} parent=1 // pred_check_branch
      %100 = sbr.rel (0) target = $region25
    $region24: #{tpu_custom_call.1} parent=1 // pred_region
      %102 = dma.done [#allocation4], 128
    $region25: #{tpu_custom_call.1} parent=1 // pred_fallthru
      _
    %103 = vsyncpa [#allocation3], 1
    %104 = vsyncpa [#allocation6], 1
    %105 = vsyncpa [#allocation4], 1

</llo_original>
